<compile_context>
chip_gen: v6e
topology: v6e:2x2x1
jax: 0.10.0
libtpu: 0.0.40
codegen_flags: <defaults>
</compile_context>

<pallas_src>
import functools

import jax
import jax.numpy as jnp
from jax.experimental import pallas as pl
from jax.experimental.pallas import tpu as pltpu


def _round_up(x, m):
    return ((x + m - 1) // m) * m


def _plan(B, C, P, pred_itemsize):
    """Pick (tile_p, nb, vmem_limit) per TPU generation, using a VMEM byte model
    that accounts for sublane/layout padding of the streamed blocks."""
    try:
        vmem_cap = pltpu.get_tpu_info().vmem_capacity_bytes
    except Exception:
        vmem_cap = None

    if vmem_cap is not None and vmem_cap <= 80 * 1024 * 1024:
        # v7x-class: 64 MiB physical VMEM, fastest HBM -> bigger tiles, headroom kept
        block_budget, vmem_limit = 10 * 1024 * 1024, 48 * 1024 * 1024
    elif vmem_cap is not None:
        # v5e / v6e: 128 MiB physical VMEM
        block_budget, vmem_limit = 12 * 1024 * 1024, 80 * 1024 * 1024
    else:
        # unknown backend: conservative
        block_budget, vmem_limit = 6 * 1024 * 1024, 32 * 1024 * 1024

    sub = 8 * (4 // pred_itemsize)                   # sublane tile: f32 -> 8, bf16 -> 16
    pred_lane = _round_up(C, sub) * pred_itemsize    # bytes / lane / batch row (padded)
    tgt_lane = 32                                    # (.,1,TP) narrow-int row -> one packed tile
    w_lane = 32                                      # (1,1,TP) f32 row pads to 8 sublanes

    # largest lane tile (multiple of 128) whose double-buffered streams fit the budget
    tile_p = (block_budget // (2 * (pred_lane + tgt_lane + w_lane)) // 128) * 128
    tile_p = int(max(128, min(tile_p, 65536, _round_up(P, 128))))

    # batch-block small images so a grid step still moves a useful amount of data
    nb = 1
    while (nb * 2 <= min(B, 8)
           and 2 * tile_p * (2 * nb * (pred_lane + tgt_lane) + w_lane) <= block_budget):
        nb *= 2
    return tile_p, nb, vmem_limit


def _pixel_ce_kernel(pred_ref, tgt_ref, w_ref, out_ref, *, n_pix, tile_p):
    # pred_ref: (nb, C, TP) native dtype | tgt_ref: (nb, 1, TP) int8/16/32
    # w_ref   : (1, 1, TP) f32           | out_ref: (1, nb, 1, 1) f32 partial sums
    x = pred_ref[...].astype(jnp.float32)           # upcast in-kernel (bf16 on the wire)
    tgt = tgt_ref[...].astype(jnp.int32)            # narrow int on the wire
    w = w_ref[...]

    # numerically-stable log-softmax pieces over the class (sublane) axis, with
    # the target gather folded onto the shared shifted logits.
    m = jnp.max(x, axis=1, keepdims=True)                               # (nb, 1, TP)
    xm = x - m
    lse = jnp.log(jnp.sum(jnp.exp(xm), axis=1, keepdims=True))          # (nb, 1, TP)
    cls = jax.lax.broadcasted_iota(jnp.int32, (1, x.shape[1], 1), 1)
    sel = jnp.sum(jnp.where(cls == tgt, xm, 0.0), axis=1, keepdims=True)

    # mask lanes past the true pixel count (ragged last tile reads stale VMEM);
    # where-select so Inf/NaN from garbage logits can never leak into the sum.
    lane = jax.lax.broadcasted_iota(jnp.int32, (1, 1, x.shape[2]), 2)
    valid = (pl.program_id(0) * tile_p + lane) < n_pix
    contrib = jnp.where(valid, (lse - sel) * w, 0.0)                    # (nb, 1, TP)

    partial = jnp.sum(contrib, axis=2, keepdims=True)                   # (nb, 1, 1)
    out_ref[...] = partial[None]                                        # (1, nb, 1, 1)


@functools.partial(jax.jit, static_argnames=("force_tile_p", "force_nb"))
def pixel_cross_entropy_pallas(pred, target, weights, force_tile_p=None, force_nb=None):
    """pred: (B, C, H, W) f32/bf16, target: (B, H, W) int, weights: (H, W) -> (B,) f32"""
    B, C, H, W = pred.shape
    P = H * W

    pred_r = pred.reshape(B, C, P)                              # native dtype on the wire
    if C <= 127:
        tgt_dtype = jnp.int8
    elif C <= 32767:
        tgt_dtype = jnp.int16
    else:
        tgt_dtype = jnp.int32
    # TODO(synk): like the PyTorch reference, no ignore_index semantics; all target
    # labels are assumed to be valid class indices in [0, C).
    tgt_r = target.astype(tgt_dtype).reshape(B, 1, P)
    w_r = weights.astype(jnp.float32).reshape(1, 1, P)

    tile_p, nb, vmem_limit = _plan(B, C, P, pred_r.dtype.itemsize)
    if force_tile_p is not None:
        tile_p = force_tile_p
    if force_nb is not None:
        nb = force_nb

    n_ptiles = (P + tile_p - 1) // tile_p
    n_bblocks = (B + nb - 1) // nb
    b_pad = n_bblocks * nb

    kernel = functools.partial(_pixel_ce_kernel, n_pix=P, tile_p=tile_p)

    partials = pl.pallas_call(
        kernel,
        out_shape=jax.ShapeDtypeStruct((n_ptiles, b_pad, 1, 1), jnp.float32),
        grid=(n_ptiles, n_bblocks),
        in_specs=[
            pl.BlockSpec((nb, C, tile_p), lambda p, b: (b, 0, p)),
            pl.BlockSpec((nb, 1, tile_p), lambda p, b: (b, 0, p)),
            # index is constant across the inner batch sweep -> weights DMA'd once per tile
            pl.BlockSpec((1, 1, tile_p), lambda p, b: (0, 0, p)),
        ],
        out_specs=pl.BlockSpec((1, nb, 1, 1), lambda p, b: (p, b, 0, 0)),
        compiler_params=pltpu.CompilerParams(
            dimension_semantics=("parallel", "parallel"),
            vmem_limit_bytes=vmem_limit,
        ),
    )(pred_r, tgt_r, w_r)

    # Reduce the tiny (n_ptiles, B_pad) partial matrix; slice off padded batch rows
    # BEFORE the sum so garbage partials from ragged batch blocks never mix in.
    return partials[:, :B, 0, 0].sum(axis=0) * jnp.float32(1.0 / P)


class PixelWeightCrossEntropyLoss:
    """Pallas port of the PyTorch module. aggregate in {'sum', 'mean', None}."""

    def __init__(self, aggregate='mean'):
        assert aggregate in ['sum', 'mean', None]
        self.aggregate = aggregate

    def __call__(self, inp, target, weights=None):
        if weights is None:
            weights = jnp.ones(inp.shape[2:], dtype=jnp.float32)
        per_batch = pixel_cross_entropy_pallas(inp, target, weights)
        if self.aggregate == 'sum':
            return per_batch.sum()
        elif self.aggregate == 'mean':
            return per_batch.mean()
        return per_batch


def _reference(pred, target, weights):
    # pure-JAX reference mirroring the PyTorch code
    logp = jax.nn.log_softmax(pred.astype(jnp.float32), axis=1)                 # (B,C,H,W)
    gathered = jnp.take_along_axis(
        logp, target[:, None, :, :].astype(jnp.int32), axis=1)[:, 0]            # (B,H,W)
    loss = -gathered * weights[None, :, :].astype(jnp.float32)
    return loss.mean(axis=(1, 2))                                                # (B,)


if __name__ == "__main__":
    key = jax.random.PRNGKey(0)

    # --- main check: f32, P multiple of 128 ---
    B, C, H, W = 2, 4, 16, 16
    k1, k2, k3 = jax.random.split(key, 3)
    pred = jax.random.normal(k1, (B, C, H, W), dtype=jnp.float32)
    target = jax.random.randint(k2, (B, H, W), 0, C, dtype=jnp.int32)
    weights = jax.random.uniform(k3, (H, W), dtype=jnp.float32)

    loss_mod = PixelWeightCrossEntropyLoss(aggregate='mean')
    out = jax.block_until_ready(loss_mod(pred, target, weights))
    per_batch = jax.block_until_ready(pixel_cross_entropy_pallas(pred, target, weights))
    ref_pb = _reference(pred, target, weights)
    assert jnp.allclose(per_batch, ref_pb, rtol=1e-5, atol=1e-5), (per_batch, ref_pb)
    assert jnp.allclose(out, ref_pb.mean(), rtol=1e-5, atol=1e-5), (out, ref_pb.mean())

    # --- odd shapes: ragged pixel tile (P=130), odd batch (B=3, batch-block padding),
    #     plus a forced multi-pixel-tile grid to exercise the weights-once path ---
    B2, C2, H2, W2 = 3, 5, 10, 13
    k4, k5, k6 = jax.random.split(jax.random.PRNGKey(1), 3)
    pred2 = jax.random.normal(k4, (B2, C2, H2, W2), dtype=jnp.float32)
    target2 = jax.random.randint(k5, (B2, H2, W2), 0, C2, dtype=jnp.int32)
    weights2 = jax.random.uniform(k6, (H2, W2), dtype=jnp.float32)
    ref2 = _reference(pred2, target2, weights2)
    pb2 = jax.block_until_ready(pixel_cross_entropy_pallas(pred2, target2, weights2))
    assert jnp.allclose(pb2, ref2, rtol=1e-5, atol=1e-5), (pb2, ref2)
    pb2_tiled = jax.block_until_ready(
        pixel_cross_entropy_pallas(pred2, target2, weights2, force_tile_p=128, force_nb=1))
    assert jnp.allclose(pb2_tiled, ref2, rtol=1e-5, atol=1e-5), (pb2_tiled, ref2)

    # --- bf16 logits on the wire (halved HBM traffic), f32 compute in-kernel ---
    pred_bf = pred.astype(jnp.bfloat16)
    pb_bf = jax.block_until_ready(pixel_cross_entropy_pallas(pred_bf, target, weights))
    ref_bf = _reference(pred_bf, target, weights)
    assert jnp.allclose(pb_bf, ref_bf, rtol=2e-3, atol=2e-3), (pb_bf, ref_bf)

    # --- weights=None default and 'sum' / None aggregates ---
    ones = jnp.ones((H, W), jnp.float32)
    pb_none = jax.block_until_ready(PixelWeightCrossEntropyLoss(aggregate=None)(pred, target))
    assert jnp.allclose(pb_none, _reference(pred, target, ones), rtol=1e-5, atol=1e-5)
    s = jax.block_until_ready(PixelWeightCrossEntropyLoss(aggregate='sum')(pred, target, weights))
    assert jnp.allclose(s, ref_pb.sum(), rtol=1e-5, atol=1e-5)

    print("KERNEL_OK")
</pallas_src>

<mosaic_0001>
module attributes {stable_mosaic.version = 11 : i64} {
  func.func @_pixel_ce_kernel(%arg0: i32, %arg1: i32, %arg2: memref<2x4x256xf32, #tpu.memory_space<vmem>>, %arg3: memref<2x1x256xi8, #tpu.memory_space<vmem>>, %arg4: memref<1x1x256xf32, #tpu.memory_space<vmem>>, %arg5: memref<1x2x1x1xf32, #tpu.memory_space<vmem>>) attributes {dimension_semantics = [#tpu.dimension_semantics<parallel>, #tpu.dimension_semantics<parallel>], iteration_bounds = array<i64: 1, 1>, scalar_prefetch = 0 : i64, scratch_operands = 0 : i64, tpu.core_type = #tpu.core_type<tc>, window_params = [{transform_indices = @transform_0, window_bounds = array<i64: 2, 4, 256>}, {transform_indices = @transform_1, window_bounds = array<i64: 2, 1, 256>}, {transform_indices = @transform_2, window_bounds = array<i64: 1, 1, 256>}, {transform_indices = @transform_3, window_bounds = array<i64: 1, 2, 1, 1>}]} {
    %c0 = arith.constant 0 : index
    %c0_0 = arith.constant 0 : index
    %c0_1 = arith.constant 0 : index
    %0 = vector.load %arg2[%c0, %c0_0, %c0_1] : memref<2x4x256xf32, #tpu.memory_space<vmem>>, vector<2x4x256xf32>
    %c0_2 = arith.constant 0 : index
    %c0_3 = arith.constant 0 : index
    %c0_4 = arith.constant 0 : index
    %1 = vector.load %arg3[%c0_2, %c0_3, %c0_4] : memref<2x1x256xi8, #tpu.memory_space<vmem>>, vector<2x1x256xi8>
    %2 = arith.extsi %1 : vector<2x1x256xi8> to vector<2x1x256xi32>
    %c0_5 = arith.constant 0 : index
    %c0_6 = arith.constant 0 : index
    %c0_7 = arith.constant 0 : index
    %3 = vector.load %arg4[%c0_5, %c0_6, %c0_7] : memref<1x1x256xf32, #tpu.memory_space<vmem>>, vector<1x1x256xf32>
    %cst = arith.constant dense<0xFF800000> : vector<2x256xf32>
    %4 = vector.multi_reduction <maximumf>, %0, %cst [1] : vector<2x4x256xf32> to vector<2x256xf32>
    %5 = vector.shape_cast %4 : vector<2x256xf32> to vector<2x1x256xf32>
    %6 = vector.broadcast %5 : vector<2x1x256xf32> to vector<2x4x256xf32>
    %7 = arith.subf %0, %6 : vector<2x4x256xf32>
    %8 = math.exp %7 : vector<2x4x256xf32>
    %cst_8 = arith.constant dense<0.000000e+00> : vector<2x256xf32>
    %9 = vector.multi_reduction <add>, %8, %cst_8 [1] : vector<2x4x256xf32> to vector<2x256xf32>
    %10 = vector.shape_cast %9 : vector<2x256xf32> to vector<2x1x256xf32>
    %11 = math.log %10 : vector<2x1x256xf32>
    %12 = tpu.iota {dimensions = array<i32: 1>} : vector<1x4x1xi32>
    %13 = vector.broadcast %12 : vector<1x4x1xi32> to vector<2x4x256xi32>
    %14 = vector.broadcast %2 : vector<2x1x256xi32> to vector<2x4x256xi32>
    %15 = arith.cmpi eq, %13, %14 : vector<2x4x256xi32>
    %cst_9 = arith.constant 0.000000e+00 : f32
    %16 = vector.broadcast %cst_9 : f32 to vector<2x4x256xf32>
    %17 = arith.select %15, %7, %16 : vector<2x4x256xi1>, vector<2x4x256xf32>
    %cst_10 = arith.constant dense<0.000000e+00> : vector<2x256xf32>
    %18 = vector.multi_reduction <add>, %17, %cst_10 [1] : vector<2x4x256xf32> to vector<2x256xf32>
    %19 = vector.shape_cast %18 : vector<2x256xf32> to vector<2x1x256xf32>
    %20 = tpu.iota {dimensions = array<i32: 2>} : vector<1x1x256xi32>
    %c256_i32 = arith.constant 256 : i32
    %21 = arith.muli %arg0, %c256_i32 : i32
    %22 = vector.broadcast %21 : i32 to vector<1x1x256xi32>
    %23 = arith.addi %22, %20 : vector<1x1x256xi32>
    %c256_i32_11 = arith.constant 256 : i32
    %24 = vector.broadcast %c256_i32_11 : i32 to vector<1x1x256xi32>
    %25 = arith.cmpi slt, %23, %24 : vector<1x1x256xi32>
    %26 = arith.subf %11, %19 : vector<2x1x256xf32>
    %27 = vector.broadcast %3 : vector<1x1x256xf32> to vector<2x1x256xf32>
    %28 = arith.mulf %26, %27 : vector<2x1x256xf32>
    %cst_12 = arith.constant 0.000000e+00 : f32
    %29 = vector.shape_cast %25 : vector<1x1x256xi1> to vector<1x1x256xi1>
    %30 = vector.broadcast %29 : vector<1x1x256xi1> to vector<2x1x256xi1>
    %31 = vector.broadcast %cst_12 : f32 to vector<2x1x256xf32>
    %32 = arith.select %30, %28, %31 : vector<2x1x256xi1>, vector<2x1x256xf32>
    %cst_13 = arith.constant dense<0.000000e+00> : vector<2x1xf32>
    %33 = vector.multi_reduction <add>, %32, %cst_13 [2] : vector<2x1x256xf32> to vector<2x1xf32>
    %34 = vector.shape_cast %33 : vector<2x1xf32> to vector<2x1x1xf32>
    %35 = vector.shape_cast %34 : vector<2x1x1xf32> to vector<1x2x1x1xf32>
    %c0_14 = arith.constant 0 : index
    %c0_15 = arith.constant 0 : index
    %c0_16 = arith.constant 0 : index
    %c0_17 = arith.constant 0 : index
    %36 = vector.load %arg5[%c0_14, %c0_15, %c0_16, %c0_17] : memref<1x2x1x1xf32, #tpu.memory_space<vmem>>, vector<1x2x1x1xf32>
    tpu.vector_store %arg5[%c0_14, %c0_15, %c0_16, %c0_17], %35 {strides = array<i32>} : memref<1x2x1x1xf32, #tpu.memory_space<vmem>>, vector<1x2x1x1xf32>,
    return
  }
  func.func @transform_0(%arg0: i32, %arg1: i32) -> (i32, i32, i32) {
    %c0_i32 = arith.constant 0 : i32
    %c0_i32_0 = arith.constant 0 : i32
    return %arg1, %c0_i32, %arg0 : i32, i32, i32
  }
  func.func @transform_1(%arg0: i32, %arg1: i32) -> (i32, i32, i32) {
    %c0_i32 = arith.constant 0 : i32
    %c0_i32_0 = arith.constant 0 : i32
    return %arg1, %c0_i32, %arg0 : i32, i32, i32
  }
  func.func @transform_2(%arg0: i32, %arg1: i32) -> (i32, i32, i32) {
    %c0_i32 = arith.constant 0 : i32
    %c0_i32_0 = arith.constant 0 : i32
    %c0_i32_1 = arith.constant 0 : i32
    return %c0_i32, %c0_i32_0, %arg0 : i32, i32, i32
  }
  func.func @transform_3(%arg0: i32, %arg1: i32) -> (i32, i32, i32, i32) {
    %c0_i32 = arith.constant 0 : i32
    %c0_i32_0 = arith.constant 0 : i32
    %c0_i32_1 = arith.constant 0 : i32
    return %arg0, %arg1, %c0_i32, %c0_i32_0 : i32, i32, i32, i32
  }
}

</mosaic_0001>

<llo_original>
// kernel: pixel_cross_entropy_pallas.1
$region0: #{pixel_cross_entropy_pallas.1}
  #allocation0 [shape = 'u32[]', space=smem, size = 0x4, offset = 0x4, fixed_abs, tag = 'smem constant byte address 0x4 - core index']
  #allocation1 [shape = 'u32[144,128]{1,0:T(1,128)}', space=vmem, size = 0x12000, scoped, tag = 'internal scratch']
  %s0 = inlined_call_operand.vmem [shape: f32[2,4,256], index: 0, kind: input, shape index: {}]
  %s1 = inlined_call_operand.vmem [shape: s8[2,1,256], index: 1, kind: input, shape index: {}]
  %s2 = inlined_call_operand.vmem [shape: f32[1,1,256], index: 2, kind: input, shape index: {}]
  %s3 = inlined_call_operand.vmem [shape: f32[1,2,1,1], index: 3, kind: output, shape index: {}]
  %s4 = sld [smem:[#allocation0]]
  $region22: #{pixel_cross_entropy_pallas.1} parent=0
    _
  %s6 = ssub.s32 1, %s4
  %s7 = scalar_select 0, %s6, %s4
  // Predicated region
  $region2: #{pixel_cross_entropy_pallas.1} parent=0 // pred_check
    _
  $region3: #{pixel_cross_entropy_pallas.1} parent=0 // pred_check_branch
    %9 = sbr.rel (0) target = $region5
  $region4: #{pixel_cross_entropy_pallas.1} parent=0 // pred_region
    _
  $region5: #{pixel_cross_entropy_pallas.1} parent=0 // pred_fallthru
    _
  // Predicated region
  $region6: #{pixel_cross_entropy_pallas.1} parent=0 // pred_check
    _
  $region7: #{pixel_cross_entropy_pallas.1} parent=0 // pred_check_branch
    %11 = sbr.rel (0) target = $region9
  $region8: #{pixel_cross_entropy_pallas.1} parent=0 // pred_region
    _
  $region9: #{pixel_cross_entropy_pallas.1} parent=0 // pred_fallthru
    _
  // Predicated region
  $region10: #{pixel_cross_entropy_pallas.1} parent=0 // pred_check
    _
  $region11: #{pixel_cross_entropy_pallas.1} parent=0 // pred_check_branch
    %13 = sbr.rel (0) target = $region13
  $region12: #{pixel_cross_entropy_pallas.1} parent=0 // pred_region
    _
  $region13: #{pixel_cross_entropy_pallas.1} parent=0 // pred_fallthru
    _
  %v14 = vld [vmem:[%s0] sm:$0xff]
  %v15 = vld [vmem:[%s0 + $0x8] sm:$0xff]
  %v16 = vld [vmem:[%s1] sm:$0x3]
  %v17 = vld [vmem:[%s1 + $0x2] sm:$0x3]
  %v18 = vunpack.c.0.s8 %v16
  %v19 = vunpack.c.0.s8 %v17
  %v20 = vld [vmem:[%s2] sm:$0x3]
  %v23 = vcombine.high %v14, %v14
  %v24 = vcombine.high %v15, %v15
  %vm27 = vcmask 1043456
  %v28 = vsel %vm27, %v14, -inf
  %v29 = vrot.slane %v28, 4
  %v30 = vmax.f32 %v28, %v29
  %v31 = vrot.slane %v30, 2
  %v32 = vmax.f32 %v30, %v31
  %v33 = vrot.slane %v32, 1
  %v34 = vmax.f32 %v32, %v33
  %v35 = vsel %vm27, %v23, -inf
  %v36 = vrot.slane %v35, 4
  %v37 = vmax.f32 %v35, %v36
  %v38 = vrot.slane %v37, 2
  %v39 = vmax.f32 %v37, %v38
  %v40 = vrot.slane %v39, 1
  %v41 = vmax.f32 %v39, %v40
  %v42 = vsel %vm27, %v15, -inf
  %v43 = vrot.slane %v42, 4
  %v44 = vmax.f32 %v42, %v43
  %v45 = vrot.slane %v44, 2
  %v46 = vmax.f32 %v44, %v45
  %v47 = vrot.slane %v46, 1
  %v48 = vmax.f32 %v46, %v47
  %v49 = vsel %vm27, %v24, -inf
  %v50 = vrot.slane %v49, 4
  %v51 = vmax.f32 %v49, %v50
  %v52 = vrot.slane %v51, 2
  %v53 = vmax.f32 %v51, %v52
  %v54 = vrot.slane %v53, 1
  %v55 = vmax.f32 %v53, %v54
  %v60 = vcombine.low %v34, %v41
  %v61 = vcombine.low %v48, %v55
  %v64 = vsub.f32 %v14, %v60
  %v65 = vsub.f32 %v15, %v61
  %v66 = vmul.f32 %v64, 1.442695
  %v67 = vpow.pop %v66
  %v68 = vmul.f32 %v65, 1.442695
  %v69 = vpow.pop %v68
  %v72 = vcombine.high %v67, %v67
  %v73 = vcombine.high %v69, %v69
  %v76 = vsel %vm27, %v67, 0.0
  %v77 = vrot.slane %v76, 4
  %v78 = vadd.f32 %v76, %v77
  %v79 = vrot.slane %v78, 2
  %v80 = vadd.f32 %v78, %v79
  %v81 = vrot.slane %v80, 1
  %v82 = vadd.f32 %v80, %v81
  %v83 = vsel %vm27, %v72, 0.0
  %v84 = vrot.slane %v83, 4
  %v85 = vadd.f32 %v83, %v84
  %v86 = vrot.slane %v85, 2
  %v87 = vadd.f32 %v85, %v86
  %v88 = vrot.slane %v87, 1
  %v89 = vadd.f32 %v87, %v88
  %v90 = vsel %vm27, %v69, 0.0
  %v91 = vrot.slane %v90, 4
  %v92 = vadd.f32 %v90, %v91
  %v93 = vrot.slane %v92, 2
  %v94 = vadd.f32 %v92, %v93
  %v95 = vrot.slane %v94, 1
  %v96 = vadd.f32 %v94, %v95
  %v97 = vsel %vm27, %v73, 0.0
  %v98 = vrot.slane %v97, 4
  %v99 = vadd.f32 %v97, %v98
  %v100 = vrot.slane %v99, 2
  %v101 = vadd.f32 %v99, %v100
  %v102 = vrot.slane %v101, 1
  %v103 = vadd.f32 %v101, %v102
  %v104 = vlog2.pop %v82
  %v105 = vmul.f32 %v104, 0.6931472
  %v106 = vlog2.pop %v89
  %v107 = vmul.f32 %v106, 0.6931472
  %v108 = vlog2.pop %v96
  %v109 = vmul.f32 %v108, 0.6931472
  %v110 = vlog2.pop %v103
  %v111 = vmul.f32 %v110, 0.6931472
  %v112 = vlaneseq
  %v113 = vshrl.u32 %v112, 7
  %v114 = vlaneseq
  %v115 = vshrl.u32 %v114, 7
  %v116 = vsub.s32 0, %v115
  %v117 = vrot.slane %v18, %v116
  %v118 = vlaneseq
  %v119 = vshrl.u32 %v118, 7
  %v120 = vsub.s32 4, %v119
  %v121 = vrot.slane %v18, %v120
  %v122 = vlaneseq
  %v123 = vshrl.u32 %v122, 7
  %v124 = vsub.s32 0, %v123
  %v125 = vrot.slane %v19, %v124
  %v126 = vlaneseq
  %v127 = vshrl.u32 %v126, 7
  %v128 = vsub.s32 4, %v127
  %v129 = vrot.slane %v19, %v128
  %v130 = vlaneseq
  %v131 = vshrl.u32 %v130, 7
  %v132 = vsub.s32 0, %v131
  %v133 = vrot.slane %v117, %v132
  %v134 = vlaneseq
  %v135 = vshrl.u32 %v134, 7
  %v136 = vsub.s32 0, %v135
  %v137 = vrot.slane %v121, %v136
  %v138 = vlaneseq
  %v139 = vshrl.u32 %v138, 7
  %v140 = vsub.s32 0, %v139
  %v141 = vrot.slane %v125, %v140
  %v142 = vlaneseq
  %v143 = vshrl.u32 %v142, 7
  %v144 = vsub.s32 0, %v143
  %v145 = vrot.slane %v129, %v144
  %vm146 = vcmp.eq.s32.totalorder %v113, %v133
  %vm147 = vcmp.eq.s32.totalorder %v113, %v137
  %vm148 = vcmp.eq.s32.totalorder %v113, %v141
  %vm149 = vcmp.eq.s32.totalorder %v113, %v145
  %v152 = vcombine.high %v64, %v64
  %v153 = vcombine.high %v65, %v65
  %v156 = vsel %vm146, %v64, 0.0
  %v157 = vsel %vm147, %v152, 0.0
  %v158 = vsel %vm148, %v65, 0.0
  %v159 = vsel %vm149, %v153, 0.0
  %v160 = vsel %vm27, %v156, 0.0
  %v161 = vrot.slane %v160, 4
  %v162 = vadd.f32 %v160, %v161
  %v163 = vrot.slane %v162, 2
  %v164 = vadd.f32 %v162, %v163
  %v165 = vrot.slane %v164, 1
  %v166 = vadd.f32 %v164, %v165
  %v167 = vsel %vm27, %v157, 0.0
  %v168 = vrot.slane %v167, 4
  %v169 = vadd.f32 %v167, %v168
  %v170 = vrot.slane %v169, 2
  %v171 = vadd.f32 %v169, %v170
  %v172 = vrot.slane %v171, 1
  %v173 = vadd.f32 %v171, %v172
  %v174 = vsel %vm27, %v158, 0.0
  %v175 = vrot.slane %v174, 4
  %v176 = vadd.f32 %v174, %v175
  %v177 = vrot.slane %v176, 2
  %v178 = vadd.f32 %v176, %v177
  %v179 = vrot.slane %v178, 1
  %v180 = vadd.f32 %v178, %v179
  %v181 = vsel %vm27, %v159, 0.0
  %v182 = vrot.slane %v181, 4
  %v183 = vadd.f32 %v181, %v182
  %v184 = vrot.slane %v183, 2
  %v185 = vadd.f32 %v183, %v184
  %v186 = vrot.slane %v185, 1
  %v187 = vadd.f32 %v185, %v186
  %v188 = vlaneseq
  %v189 = vand.u32 %v188, 127
  %v190 = vadd.s32 %v189, 128
  %s191 = smul.u32 0, 256
  %v192 = vstv %s191
  %v193 = vadd.s32 %v192, %v189
  %v194 = vadd.s32 %v192, %v190
  %vm195 = vcmp.lt.s32.totalorder %v193, 256
  %vm196 = vcmp.lt.s32.totalorder %v194, 256
  %v197 = vsub.f32 %v105, %v166
  %v198 = vsub.f32 %v107, %v173
  %v199 = vsub.f32 %v109, %v180
  %v200 = vsub.f32 %v111, %v187
  %v202 = vlaneseq
  %v203 = vshrl.u32 %v202, 7
  %v204 = vsub.s32 0, %v203
  %v205 = vrot.slane %v20, %v204
  %v206 = vlaneseq
  %v207 = vshrl.u32 %v206, 7
  %v208 = vsub.s32 1, %v207
  %v209 = vrot.slane %v20, %v208
  %v212 = vmul.f32 %v197, %v205
  %v213 = vmul.f32 %v198, %v209
  %v214 = vmul.f32 %v199, %v205
  %v215 = vmul.f32 %v200, %v209
  %v216 = vsel %vm195, 1, 0
  %v217 = vsel %vm196, 1, 0
  %vm218 = vcmp.eq.s32.totalorder %v216, 1
  %vm219 = vcmp.eq.s32.totalorder %v217, 1
  %v220 = vsel %vm218, %v212, 0.0
  %v221 = vsel %vm219, %v213, 0.0
  %v222 = vsel %vm218, %v214, 0.0
  %v223 = vsel %vm219, %v215, 0.0
  %vm224 = vcmask 1040384
  %v225 = vsel %vm224, %v220, 0.0
  %v226 = vsel %vm224, %v221, 0.0
  %v227 = vadd.f32 %v225, %v226
  %228 = vadd.xlane.f32.xlu0 %v227
  %v229 = vpop.xlane.xlu0 %228
  %v230 = vsel %vm224, %v222, 0.0
  %v231 = vsel %vm224, %v223, 0.0
  %v232 = vadd.f32 %v230, %v231
  %233 = vadd.xlane.f32.xlu0 %v232
  %v234 = vpop.xlane.xlu0 %233
  %vm235 = vcmask 0
  %236 = vst.msk [vmem:[%s3] sm:$0x1] %vm235, %v229
  %237 = vst.msk [vmem:[%s3 + $0x1] sm:$0x1] %vm235, %v234
  // Predicated region
  $region14: #{pixel_cross_entropy_pallas.1} parent=0 // pred_check
    _
  $region15: #{pixel_cross_entropy_pallas.1} parent=0 // pred_check_branch
    %239 = sbr.rel (0) target = $region17
  $region16: #{pixel_cross_entropy_pallas.1} parent=0 // pred_region
    _
  $region17: #{pixel_cross_entropy_pallas.1} parent=0 // pred_fallthru
    _
  // Predicated region
  $region18: #{pixel_cross_entropy_pallas.1} parent=0 // pred_check
    _
  $region19: #{pixel_cross_entropy_pallas.1} parent=0 // pred_check_branch
    %241 = sbr.rel (0) target = $region21
  $region20: #{pixel_cross_entropy_pallas.1} parent=0 // pred_region
    _
  $region21: #{pixel_cross_entropy_pallas.1} parent=0 // pred_fallthru
    _

</llo_original>
